<compile_context>
chip_gen: v5e
topology: v5e:2x2
jax: 0.10.0
libtpu: 0.0.40
codegen_flags: <defaults>
</compile_context>

<pallas_src>
import jax
import jax.numpy as jnp
from jax.experimental import pallas as pl
from jax.experimental.pallas import tpu as pltpu

BN_EPS = 1e-5


def frelu_kernel(wb_ref, x_ref, o_ref):
    # wb_ref : SMEM (10, C)        rows 0..8 = 3x3 depthwise weights, row 9 = conv bias
    # x_ref  : VMEM (N, Cb, H, W)  input slab for this channel block (original x, no pad)
    # o_ref  : VMEM (N, Cb, H, W)  output slab
    N, Cb, H, W = x_ref.shape
    c0 = pl.program_id(0) * Cb

    x = x_ref[...].astype(jnp.float32)                       # (N, Cb, H, W)

    # Lane-direction (W) shifted slabs, built ONCE for the whole channel block
    # (they are channel independent):
    #   x_wm[..., w] = x[..., w-1]   (zero at w=0)
    #   x_wp[..., w] = x[..., w+1]   (zero at w=W-1)
    # This is the conv's zero padding along W, realized in VMEM.
    zcol = jnp.zeros((N, Cb, H, 1), jnp.float32)
    x_wm = jnp.concatenate([zcol, x[:, :, :, : W - 1]], axis=3)
    x_wp = jnp.concatenate([x[:, :, :, 1:], zcol], axis=3)

    zrow = jnp.zeros((N, 1, W), jnp.float32)                  # hoisted out of the loop
    n_elem = N * H * W

    for cb in range(Cb):                                      # small, unrolled
        c = c0 + cb
        w = [wb_ref[k, c] for k in range(9)]                  # scalar reads from SMEM
        bias = wb_ref[9, c]

        xc, xm, xp = x[:, cb], x_wm[:, cb], x_wp[:, cb]       # (N, H, W) each

        # Per-row contributions of the 3x3 kernel (W offsets already folded in
        # via the pre-shifted slabs), then combine with +/-1 H (sublane) shifts.
        t0 = w[0] * xm + w[1] * xc + w[2] * xp                # needs H offset -1
        t1 = w[3] * xm + w[4] * xc + w[5] * xp                # H offset 0
        t2 = w[6] * xm + w[7] * xc + w[8] * xp                # needs H offset +1

        acc = (t1
               + jnp.concatenate([zrow, t0[:, : H - 1, :]], axis=1)
               + jnp.concatenate([t2[:, 1:, :], zrow], axis=1)
               + bias)

        # BatchNorm2d (training mode): batch stats over (N, H, W), biased
        # variance, eps=1e-5, affine weight=1 / bias=0.  One pass (sum and
        # sum-of-squares while acc is hot), with a clamp against catastrophic
        # cancellation making the variance slightly negative.
        # NOTE: BN statistics need the full (N, H, W) slab of a channel in one
        # grid step; any future tiling over N/H/W must switch to a two-pass
        # accumulate-then-normalize structure.
        s = jnp.sum(acc)
        ss = jnp.sum(acc * acc)
        mean = s / n_elem
        var = jnp.maximum(ss / n_elem - mean * mean, 0.0)
        inv = jax.lax.rsqrt(var + BN_EPS)
        x1 = (acc - mean) * inv

        o_ref[:, cb, :, :] = jnp.maximum(xc, x1).astype(o_ref.dtype)


def _pick_channel_block(N, C, H, W, *, budget_bytes=2 << 20, max_cb=8):
    """Largest Cb dividing C whose f32 (N,Cb,H,W) slab fits the per-block budget.

    Prefers Cb <= C//2 so the grid has >= 2 steps (keeps the channel axis
    shardable across both TensorCores on v7x)."""
    per_channel = N * H * W * 4
    divisors = [d for d in range(1, min(C, max_cb) + 1)
                if C % d == 0 and d * per_channel <= budget_bytes]
    if not divisors:
        return 1
    preferred = [d for d in divisors if C // d >= 2]
    return max(preferred) if preferred else max(divisors)


def frelu(x, weight, bias):
    """x: (N, C, H, W); weight: (C, 1, 3, 3); bias: (C,)."""
    N, C, H, W = x.shape
    Cb = _pick_channel_block(N, C, H, W)

    # (10, C) scalar table for SMEM: C on the fast axis (avoids the (C, 10)
    # SMEM padding blow-up).
    wb = jnp.concatenate(
        [weight.reshape(C, 9).T.astype(jnp.float32),
         bias.reshape(1, C).astype(jnp.float32)], axis=0)

    return pl.pallas_call(
        frelu_kernel,
        out_shape=jax.ShapeDtypeStruct((N, C, H, W), x.dtype),
        grid=(C // Cb,),
        in_specs=[
            pl.BlockSpec(memory_space=pltpu.MemorySpace.SMEM),      # (10, C) weights+bias
            pl.BlockSpec((N, Cb, H, W), lambda g: (0, g, 0, 0)),    # input slab (single stream)
        ],
        out_specs=pl.BlockSpec((N, Cb, H, W), lambda g: (0, g, 0, 0)),
        compiler_params=pltpu.CompilerParams(
            dimension_semantics=("parallel",),
            vmem_limit_bytes=32 * 1024 * 1024),
    )(wb, x)


def frelu_ref(x, weight, bias):
    """Pure-JAX reference mirroring the PyTorch module (training-mode BN)."""
    N, C, H, W = x.shape
    y = jax.lax.conv_general_dilated(
        x, weight, window_strides=(1, 1), padding=((1, 1), (1, 1)),
        dimension_numbers=("NCHW", "OIHW", "NCHW"), feature_group_count=C)
    y = y + bias[None, :, None, None]
    mean = y.mean(axis=(0, 2, 3), keepdims=True)
    var = y.var(axis=(0, 2, 3), keepdims=True)   # biased variance, as BN uses for normalization
    x1 = (y - mean) / jnp.sqrt(var + BN_EPS)
    return jnp.maximum(x, x1)


if __name__ == "__main__":
    key = jax.random.PRNGKey(0)
    kx, kw, kb = jax.random.split(key, 3)

    N, C, H, W = 2, 4, 16, 16
    x = jax.random.normal(kx, (N, C, H, W), dtype=jnp.float32)

    # Deterministic parameter init mirroring the module's __init__:
    # conv weight ~ kaiming_normal_(mode='fan_out', relu): std = sqrt(2 / (C * 3 * 3))
    fan_out = C * 3 * 3
    weight = jax.random.normal(kw, (C, 1, 3, 3), dtype=jnp.float32) * jnp.sqrt(2.0 / fan_out)
    # conv bias: default PyTorch uniform(-1/sqrt(fan_in), 1/sqrt(fan_in)), fan_in = 9
    bias = jax.random.uniform(kb, (C,), dtype=jnp.float32,
                              minval=-1.0 / jnp.sqrt(9.0), maxval=1.0 / jnp.sqrt(9.0))
    # BN affine params: weight=1, bias=0 (identity, folded into the kernel).

    out = frelu(x, weight, bias)
    out = jax.block_until_ready(out)

    ref = frelu_ref(x, weight, bias)
    assert out.shape == ref.shape and out.dtype == ref.dtype
    assert jnp.allclose(out, ref, atol=1e-4, rtol=1e-4), "mismatch vs reference"

    print("KERNEL_OK")
</pallas_src>

<mosaic_0001>
module attributes {stable_mosaic.version = 11 : i64} {
  func.func @frelu_kernel(%arg0: i32, %arg1: memref<10x4xf32, #tpu.memory_space<smem>>, %arg2: memref<2x2x16x16xf32, #tpu.memory_space<vmem>>, %arg3: memref<2x2x16x16xf32, #tpu.memory_space<vmem>>) attributes {dimension_semantics = [#tpu.dimension_semantics<parallel>], iteration_bounds = array<i64: 2>, scalar_prefetch = 0 : i64, scratch_operands = 0 : i64, tpu.core_type = #tpu.core_type<tc>, window_params = [{transform_indices = @transform_0, window_bounds = array<i64: 10, 4>}, {transform_indices = @transform_1, window_bounds = array<i64: 2, 2, 16, 16>}, {transform_indices = @transform_2, window_bounds = array<i64: 2, 2, 16, 16>}]} {
    %c2_i32 = arith.constant 2 : i32
    %0 = arith.muli %arg0, %c2_i32 : i32
    %c0 = arith.constant 0 : index
    %c0_0 = arith.constant 0 : index
    %c0_1 = arith.constant 0 : index
    %c0_2 = arith.constant 0 : index
    %1 = vector.load %arg2[%c0, %c0_0, %c0_1, %c0_2] : memref<2x2x16x16xf32, #tpu.memory_space<vmem>>, vector<2x2x16x16xf32>
    %cst = arith.constant 0.000000e+00 : f32
    %2 = vector.broadcast %cst : f32 to vector<2x2x16x1xf32>
    %3 = vector.extract_strided_slice %1 {offsets = [0, 0, 0, 0], sizes = [2, 2, 16, 15], strides = [1, 1, 1, 1]} : vector<2x2x16x16xf32> to vector<2x2x16x15xf32>
    %4 = tpu.concatenate %2, %3 in 3 : vector<2x2x16x1xf32>, vector<2x2x16x15xf32> -> vector<2x2x16x16xf32>
    %5 = vector.extract_strided_slice %1 {offsets = [0, 0, 0, 1], sizes = [2, 2, 16, 15], strides = [1, 1, 1, 1]} : vector<2x2x16x16xf32> to vector<2x2x16x15xf32>
    %6 = tpu.concatenate %5, %2 in 3 : vector<2x2x16x15xf32>, vector<2x2x16x1xf32> -> vector<2x2x16x16xf32>
    %cst_3 = arith.constant 0.000000e+00 : f32
    %7 = vector.broadcast %cst_3 : f32 to vector<2x1x16xf32>
    %c0_i32 = arith.constant 0 : i32
    %8 = arith.addi %0, %c0_i32 : i32
    %c0_4 = arith.constant 0 : index
    %9 = arith.index_cast %8 : i32 to index
    %10 = memref.load %arg1[%c0_4, %9] : memref<10x4xf32, #tpu.memory_space<smem>>
    %c1 = arith.constant 1 : index
    %11 = arith.index_cast %8 : i32 to index
    %12 = memref.load %arg1[%c1, %11] : memref<10x4xf32, #tpu.memory_space<smem>>
    %c2 = arith.constant 2 : index
    %13 = arith.index_cast %8 : i32 to index
    %14 = memref.load %arg1[%c2, %13] : memref<10x4xf32, #tpu.memory_space<smem>>
    %c3 = arith.constant 3 : index
    %15 = arith.index_cast %8 : i32 to index
    %16 = memref.load %arg1[%c3, %15] : memref<10x4xf32, #tpu.memory_space<smem>>
    %c4 = arith.constant 4 : index
    %17 = arith.index_cast %8 : i32 to index
    %18 = memref.load %arg1[%c4, %17] : memref<10x4xf32, #tpu.memory_space<smem>>
    %c5 = arith.constant 5 : index
    %19 = arith.index_cast %8 : i32 to index
    %20 = memref.load %arg1[%c5, %19] : memref<10x4xf32, #tpu.memory_space<smem>>
    %c6 = arith.constant 6 : index
    %21 = arith.index_cast %8 : i32 to index
    %22 = memref.load %arg1[%c6, %21] : memref<10x4xf32, #tpu.memory_space<smem>>
    %c7 = arith.constant 7 : index
    %23 = arith.index_cast %8 : i32 to index
    %24 = memref.load %arg1[%c7, %23] : memref<10x4xf32, #tpu.memory_space<smem>>
    %c8 = arith.constant 8 : index
    %25 = arith.index_cast %8 : i32 to index
    %26 = memref.load %arg1[%c8, %25] : memref<10x4xf32, #tpu.memory_space<smem>>
    %c9 = arith.constant 9 : index
    %27 = arith.index_cast %8 : i32 to index
    %28 = memref.load %arg1[%c9, %27] : memref<10x4xf32, #tpu.memory_space<smem>>
    %29 = vector.extract_strided_slice %1 {offsets = [0, 0, 0, 0], sizes = [2, 1, 16, 16], strides = [1, 1, 1, 1]} : vector<2x2x16x16xf32> to vector<2x1x16x16xf32>
    %30 = vector.shape_cast %29 : vector<2x1x16x16xf32> to vector<2x16x16xf32>
    %31 = vector.extract_strided_slice %4 {offsets = [0, 0, 0, 0], sizes = [2, 1, 16, 16], strides = [1, 1, 1, 1]} : vector<2x2x16x16xf32> to vector<2x1x16x16xf32>
    %32 = vector.shape_cast %31 : vector<2x1x16x16xf32> to vector<2x16x16xf32>
    %33 = vector.extract_strided_slice %6 {offsets = [0, 0, 0, 0], sizes = [2, 1, 16, 16], strides = [1, 1, 1, 1]} : vector<2x2x16x16xf32> to vector<2x1x16x16xf32>
    %34 = vector.shape_cast %33 : vector<2x1x16x16xf32> to vector<2x16x16xf32>
    %35 = vector.broadcast %10 : f32 to vector<2x16x16xf32>
    %36 = arith.mulf %35, %32 : vector<2x16x16xf32>
    %37 = vector.broadcast %12 : f32 to vector<2x16x16xf32>
    %38 = arith.mulf %37, %30 : vector<2x16x16xf32>
    %39 = arith.addf %36, %38 : vector<2x16x16xf32>
    %40 = vector.broadcast %14 : f32 to vector<2x16x16xf32>
    %41 = arith.mulf %40, %34 : vector<2x16x16xf32>
    %42 = arith.addf %39, %41 : vector<2x16x16xf32>
    %43 = vector.broadcast %16 : f32 to vector<2x16x16xf32>
    %44 = arith.mulf %43, %32 : vector<2x16x16xf32>
    %45 = vector.broadcast %18 : f32 to vector<2x16x16xf32>
    %46 = arith.mulf %45, %30 : vector<2x16x16xf32>
    %47 = arith.addf %44, %46 : vector<2x16x16xf32>
    %48 = vector.broadcast %20 : f32 to vector<2x16x16xf32>
    %49 = arith.mulf %48, %34 : vector<2x16x16xf32>
    %50 = arith.addf %47, %49 : vector<2x16x16xf32>
    %51 = vector.broadcast %22 : f32 to vector<2x16x16xf32>
    %52 = arith.mulf %51, %32 : vector<2x16x16xf32>
    %53 = vector.broadcast %24 : f32 to vector<2x16x16xf32>
    %54 = arith.mulf %53, %30 : vector<2x16x16xf32>
    %55 = arith.addf %52, %54 : vector<2x16x16xf32>
    %56 = vector.broadcast %26 : f32 to vector<2x16x16xf32>
    %57 = arith.mulf %56, %34 : vector<2x16x16xf32>
    %58 = arith.addf %55, %57 : vector<2x16x16xf32>
    %59 = vector.extract_strided_slice %42 {offsets = [0, 0, 0], sizes = [2, 15, 16], strides = [1, 1, 1]} : vector<2x16x16xf32> to vector<2x15x16xf32>
    %60 = tpu.concatenate %7, %59 in 1 : vector<2x1x16xf32>, vector<2x15x16xf32> -> vector<2x16x16xf32>
    %61 = arith.addf %50, %60 : vector<2x16x16xf32>
    %62 = vector.extract_strided_slice %58 {offsets = [0, 1, 0], sizes = [2, 15, 16], strides = [1, 1, 1]} : vector<2x16x16xf32> to vector<2x15x16xf32>
    %63 = tpu.concatenate %62, %7 in 1 : vector<2x15x16xf32>, vector<2x1x16xf32> -> vector<2x16x16xf32>
    %64 = arith.addf %61, %63 : vector<2x16x16xf32>
    %65 = vector.broadcast %28 : f32 to vector<2x16x16xf32>
    %66 = arith.addf %64, %65 : vector<2x16x16xf32>
    %67 = vector.shape_cast %66 : vector<2x16x16xf32> to vector<1x2x16x16xf32>
    %cst_5 = arith.constant dense<0.000000e+00> : vector<1xf32>
    %68 = vector.multi_reduction <add>, %67, %cst_5 [1, 2, 3] : vector<1x2x16x16xf32> to vector<1xf32>
    %69 = vector.shape_cast %68 : vector<1xf32> to vector<1x1x1x1xf32>
    %70 = vector.extract %69[0, 0, 0, 0] : f32 from vector<1x1x1x1xf32>
    %71 = arith.mulf %66, %66 : vector<2x16x16xf32>
    %72 = vector.shape_cast %71 : vector<2x16x16xf32> to vector<1x2x16x16xf32>
    %cst_6 = arith.constant dense<0.000000e+00> : vector<1xf32>
    %73 = vector.multi_reduction <add>, %72, %cst_6 [1, 2, 3] : vector<1x2x16x16xf32> to vector<1xf32>
    %74 = vector.shape_cast %73 : vector<1xf32> to vector<1x1x1x1xf32>
    %75 = vector.extract %74[0, 0, 0, 0] : f32 from vector<1x1x1x1xf32>
    %cst_7 = arith.constant 5.120000e+02 : f32
    %76 = arith.divf %70, %cst_7 : f32
    %cst_8 = arith.constant 5.120000e+02 : f32
    %77 = arith.divf %75, %cst_8 : f32
    %78 = arith.mulf %76, %76 : f32
    %79 = arith.subf %77, %78 : f32
    %cst_9 = arith.constant 0.000000e+00 : f32
    %80 = arith.maximumf %79, %cst_9 : f32
    %cst_10 = arith.constant 9.99999974E-6 : f32
    %81 = arith.addf %80, %cst_10 : f32
    %82 = math.rsqrt %81 : f32
    %83 = vector.broadcast %76 : f32 to vector<2x16x16xf32>
    %84 = arith.subf %66, %83 : vector<2x16x16xf32>
    %85 = vector.broadcast %82 : f32 to vector<2x16x16xf32>
    %86 = arith.mulf %84, %85 : vector<2x16x16xf32>
    %87 = arith.maximumf %30, %86 : vector<2x16x16xf32>
    %c0_11 = arith.constant 0 : index
    %c0_12 = arith.constant 0 : index
    %c0_13 = arith.constant 0 : index
    %c0_14 = arith.constant 0 : index
    %88 = vector.load %arg3[%c0_11, %c0_12, %c0_13, %c0_14] : memref<2x2x16x16xf32, #tpu.memory_space<vmem>>, vector<2x1x16x16xf32>
    %89 = vector.shape_cast %88 : vector<2x1x16x16xf32> to vector<2x16x16xf32>
    %90 = vector.shape_cast %87 : vector<2x16x16xf32> to vector<2x1x16x16xf32>
    tpu.vector_store %arg3[%c0_11, %c0_12, %c0_13, %c0_14], %90 {strides = array<i32>} : memref<2x2x16x16xf32, #tpu.memory_space<vmem>>, vector<2x1x16x16xf32>,
    %c1_i32 = arith.constant 1 : i32
    %91 = arith.addi %0, %c1_i32 : i32
    %c0_15 = arith.constant 0 : index
    %92 = arith.index_cast %91 : i32 to index
    %93 = memref.load %arg1[%c0_15, %92] : memref<10x4xf32, #tpu.memory_space<smem>>
    %c1_16 = arith.constant 1 : index
    %94 = arith.index_cast %91 : i32 to index
    %95 = memref.load %arg1[%c1_16, %94] : memref<10x4xf32, #tpu.memory_space<smem>>
    %c2_17 = arith.constant 2 : index
    %96 = arith.index_cast %91 : i32 to index
    %97 = memref.load %arg1[%c2_17, %96] : memref<10x4xf32, #tpu.memory_space<smem>>
    %c3_18 = arith.constant 3 : index
    %98 = arith.index_cast %91 : i32 to index
    %99 = memref.load %arg1[%c3_18, %98] : memref<10x4xf32, #tpu.memory_space<smem>>
    %c4_19 = arith.constant 4 : index
    %100 = arith.index_cast %91 : i32 to index
    %101 = memref.load %arg1[%c4_19, %100] : memref<10x4xf32, #tpu.memory_space<smem>>
    %c5_20 = arith.constant 5 : index
    %102 = arith.index_cast %91 : i32 to index
    %103 = memref.load %arg1[%c5_20, %102] : memref<10x4xf32, #tpu.memory_space<smem>>
    %c6_21 = arith.constant 6 : index
    %104 = arith.index_cast %91 : i32 to index
    %105 = memref.load %arg1[%c6_21, %104] : memref<10x4xf32, #tpu.memory_space<smem>>
    %c7_22 = arith.constant 7 : index
    %106 = arith.index_cast %91 : i32 to index
    %107 = memref.load %arg1[%c7_22, %106] : memref<10x4xf32, #tpu.memory_space<smem>>
    %c8_23 = arith.constant 8 : index
    %108 = arith.index_cast %91 : i32 to index
    %109 = memref.load %arg1[%c8_23, %108] : memref<10x4xf32, #tpu.memory_space<smem>>
    %c9_24 = arith.constant 9 : index
    %110 = arith.index_cast %91 : i32 to index
    %111 = memref.load %arg1[%c9_24, %110] : memref<10x4xf32, #tpu.memory_space<smem>>
    %112 = vector.extract_strided_slice %1 {offsets = [0, 1, 0, 0], sizes = [2, 1, 16, 16], strides = [1, 1, 1, 1]} : vector<2x2x16x16xf32> to vector<2x1x16x16xf32>
    %113 = vector.shape_cast %112 : vector<2x1x16x16xf32> to vector<2x16x16xf32>
    %114 = vector.extract_strided_slice %4 {offsets = [0, 1, 0, 0], sizes = [2, 1, 16, 16], strides = [1, 1, 1, 1]} : vector<2x2x16x16xf32> to vector<2x1x16x16xf32>
    %115 = vector.shape_cast %114 : vector<2x1x16x16xf32> to vector<2x16x16xf32>
    %116 = vector.extract_strided_slice %6 {offsets = [0, 1, 0, 0], sizes = [2, 1, 16, 16], strides = [1, 1, 1, 1]} : vector<2x2x16x16xf32> to vector<2x1x16x16xf32>
    %117 = vector.shape_cast %116 : vector<2x1x16x16xf32> to vector<2x16x16xf32>
    %118 = vector.broadcast %93 : f32 to vector<2x16x16xf32>
    %119 = arith.mulf %118, %115 : vector<2x16x16xf32>
    %120 = vector.broadcast %95 : f32 to vector<2x16x16xf32>
    %121 = arith.mulf %120, %113 : vector<2x16x16xf32>
    %122 = arith.addf %119, %121 : vector<2x16x16xf32>
    %123 = vector.broadcast %97 : f32 to vector<2x16x16xf32>
    %124 = arith.mulf %123, %117 : vector<2x16x16xf32>
    %125 = arith.addf %122, %124 : vector<2x16x16xf32>
    %126 = vector.broadcast %99 : f32 to vector<2x16x16xf32>
    %127 = arith.mulf %126, %115 : vector<2x16x16xf32>
    %128 = vector.broadcast %101 : f32 to vector<2x16x16xf32>
    %129 = arith.mulf %128, %113 : vector<2x16x16xf32>
    %130 = arith.addf %127, %129 : vector<2x16x16xf32>
    %131 = vector.broadcast %103 : f32 to vector<2x16x16xf32>
    %132 = arith.mulf %131, %117 : vector<2x16x16xf32>
    %133 = arith.addf %130, %132 : vector<2x16x16xf32>
    %134 = vector.broadcast %105 : f32 to vector<2x16x16xf32>
    %135 = arith.mulf %134, %115 : vector<2x16x16xf32>
    %136 = vector.broadcast %107 : f32 to vector<2x16x16xf32>
    %137 = arith.mulf %136, %113 : vector<2x16x16xf32>
    %138 = arith.addf %135, %137 : vector<2x16x16xf32>
    %139 = vector.broadcast %109 : f32 to vector<2x16x16xf32>
    %140 = arith.mulf %139, %117 : vector<2x16x16xf32>
    %141 = arith.addf %138, %140 : vector<2x16x16xf32>
    %142 = vector.extract_strided_slice %125 {offsets = [0, 0, 0], sizes = [2, 15, 16], strides = [1, 1, 1]} : vector<2x16x16xf32> to vector<2x15x16xf32>
    %143 = tpu.concatenate %7, %142 in 1 : vector<2x1x16xf32>, vector<2x15x16xf32> -> vector<2x16x16xf32>
    %144 = arith.addf %133, %143 : vector<2x16x16xf32>
    %145 = vector.extract_strided_slice %141 {offsets = [0, 1, 0], sizes = [2, 15, 16], strides = [1, 1, 1]} : vector<2x16x16xf32> to vector<2x15x16xf32>
    %146 = tpu.concatenate %145, %7 in 1 : vector<2x15x16xf32>, vector<2x1x16xf32> -> vector<2x16x16xf32>
    %147 = arith.addf %144, %146 : vector<2x16x16xf32>
    %148 = vector.broadcast %111 : f32 to vector<2x16x16xf32>
    %149 = arith.addf %147, %148 : vector<2x16x16xf32>
    %150 = vector.shape_cast %149 : vector<2x16x16xf32> to vector<1x2x16x16xf32>
    %cst_25 = arith.constant dense<0.000000e+00> : vector<1xf32>
    %151 = vector.multi_reduction <add>, %150, %cst_25 [1, 2, 3] : vector<1x2x16x16xf32> to vector<1xf32>
    %152 = vector.shape_cast %151 : vector<1xf32> to vector<1x1x1x1xf32>
    %153 = vector.extract %152[0, 0, 0, 0] : f32 from vector<1x1x1x1xf32>
    %154 = arith.mulf %149, %149 : vector<2x16x16xf32>
    %155 = vector.shape_cast %154 : vector<2x16x16xf32> to vector<1x2x16x16xf32>
    %cst_26 = arith.constant dense<0.000000e+00> : vector<1xf32>
    %156 = vector.multi_reduction <add>, %155, %cst_26 [1, 2, 3] : vector<1x2x16x16xf32> to vector<1xf32>
    %157 = vector.shape_cast %156 : vector<1xf32> to vector<1x1x1x1xf32>
    %158 = vector.extract %157[0, 0, 0, 0] : f32 from vector<1x1x1x1xf32>
    %cst_27 = arith.constant 5.120000e+02 : f32
    %159 = arith.divf %153, %cst_27 : f32
    %cst_28 = arith.constant 5.120000e+02 : f32
    %160 = arith.divf %158, %cst_28 : f32
    %161 = arith.mulf %159, %159 : f32
    %162 = arith.subf %160, %161 : f32
    %cst_29 = arith.constant 0.000000e+00 : f32
    %163 = arith.maximumf %162, %cst_29 : f32
    %cst_30 = arith.constant 9.99999974E-6 : f32
    %164 = arith.addf %163, %cst_30 : f32
    %165 = math.rsqrt %164 : f32
    %166 = vector.broadcast %159 : f32 to vector<2x16x16xf32>
    %167 = arith.subf %149, %166 : vector<2x16x16xf32>
    %168 = vector.broadcast %165 : f32 to vector<2x16x16xf32>
    %169 = arith.mulf %167, %168 : vector<2x16x16xf32>
    %170 = arith.maximumf %113, %169 : vector<2x16x16xf32>
    %c0_31 = arith.constant 0 : index
    %c1_32 = arith.constant 1 : index
    %c0_33 = arith.constant 0 : index
    %c0_34 = arith.constant 0 : index
    %171 = vector.load %arg3[%c0_31, %c1_32, %c0_33, %c0_34] : memref<2x2x16x16xf32, #tpu.memory_space<vmem>>, vector<2x1x16x16xf32>
    %172 = vector.shape_cast %171 : vector<2x1x16x16xf32> to vector<2x16x16xf32>
    %173 = vector.shape_cast %170 : vector<2x16x16xf32> to vector<2x1x16x16xf32>
    tpu.vector_store %arg3[%c0_31, %c1_32, %c0_33, %c0_34], %173 {strides = array<i32>} : memref<2x2x16x16xf32, #tpu.memory_space<vmem>>, vector<2x1x16x16xf32>,
    return
  }
  func.func @transform_0(%arg0: i32) -> (i32, i32) {
    %c0_i32 = arith.constant 0 : i32
    %c0_i32_0 = arith.constant 0 : i32
    %c0_i32_1 = arith.constant 0 : i32
    return %c0_i32, %c0_i32_0 : i32, i32
  }
  func.func @transform_1(%arg0: i32) -> (i32, i32, i32, i32) {
    %c0_i32 = arith.constant 0 : i32
    %c0_i32_0 = arith.constant 0 : i32
    %c0_i32_1 = arith.constant 0 : i32
    %c0_i32_2 = arith.constant 0 : i32
    return %c0_i32, %arg0, %c0_i32_0, %c0_i32_1 : i32, i32, i32, i32
  }
  func.func @transform_2(%arg0: i32) -> (i32, i32, i32, i32) {
    %c0_i32 = arith.constant 0 : i32
    %c0_i32_0 = arith.constant 0 : i32
    %c0_i32_1 = arith.constant 0 : i32
    %c0_i32_2 = arith.constant 0 : i32
    return %c0_i32, %arg0, %c0_i32_0, %c0_i32_1 : i32, i32, i32, i32
  }
}

</mosaic_0001>

<llo_original>
// kernel: tpu_custom_call.1
$region0: #{tpu_custom_call.1}
  #allocation0 [shape = 'u32[]', space=smem, size = 0x4, offset = 0x4, fixed_abs, tag = 'smem constant byte address 0x4 - core index']
  #allocation1 [shape = 'u32[72,128]{1,0:T(1,128)}', space=vmem, size = 0x9000, scoped, tag = 'internal scratch']
  #allocation8 [shape = 's32[]', space=sflag, size = 0x4, offset = 0, fixed_abs, tag = 'sflag constant byte address 0x0 - dummy sync flag']
  #allocation10 [shape = 's32[]', space=sflag, size = 0x4, offset = 0, fixed_abs, tag = 'sflag constant byte address 0x0 - dummy sync flag']
  %s0 = inlined_call_operand.vmem [shape: f32[10,4], index: 0, kind: input, shape index: {}]
  %s1 = inlined_call_operand.hbm [shape: f32[2,4,16,16], index: 1, kind: input, shape index: {}]
  %s2 = inlined_call_operand.hbm [shape: f32[2,4,16,16], index: 2, kind: output, shape index: {}]
  %s3 = sld [smem:[#allocation0]]
  $region49: #{tpu_custom_call.1} parent=0
    _
  %s5 = ssub.s32 1, %s3
  %s6 = scalar_select 0, %s5, %s3
  $region1: #{tpu_custom_call.1} parent=0
    #allocation2 [shape = 'u8[8192]{0}', space=smem, size = 0x2000, scoped, tag = 'input window, operand 0, single buffered']
    #allocation3 [shape = 's32[2]{0}', space=sflag, size = 0x8, scoped, tag = 'scoped memory for tpu_custom_call.1']
    #allocation4 [shape = 's32[2]{0}', space=sflag, size = 0x8, scoped, tag = 'scoped memory for tpu_custom_call.1']
    #allocation5 [shape = 's32[2]{0}', space=sflag, size = 0x8, scoped, tag = 'scoped memory for tpu_custom_call.1']
    #allocation6 [shape = 'u8[65536]{0}', space=vmem, size = 0x10000, scoped, tag = 'input window, operand 1']
    #allocation7 [shape = 'u8[65536]{0}', space=vmem, size = 0x10000, scoped, tag = 'output window, operand 0']
    %7 = vsyncpa [#allocation5], 0
    %8 = vsyncpa [#allocation3], 0
    %s9 = scalar_lea.sflag [#allocation3], 1
    %10 = vsyncpa %s9, 0
    %11 = vsyncpa [#allocation4], 0
    %s12 = scalar_lea.sflag [#allocation4], 1
    %13 = vsyncpa %s12, 0
    loop: start=0, step=1, limit=4
    $region2: #{tpu_custom_call.1} parent=1 // loop_pre_header
      _
    $region3: #{tpu_custom_call.1} parent=1 // loop_header
      %s15 = sphi 0, %s19
      %p16 = scmp.ge.s32.totalorder %s15, 4
      %s23 = sphi 0, %s23
      %s25 = sphi 0, %s23
      %s26 = sphi 0, %s25
      %s40 = sphi 0, %s26
      %s46 = sphi 0, %s48
      %s49 = sphi 0, %s46
      %s50 = sphi 0, %s49
      %s66 = sphi 0, %s50
      %s72 = sphi 0, %s74
      %s75 = sphi 0, %s72
      %s76 = sphi 0, %s75
      %s92 = sphi 0, %s76
    $region4: #{tpu_custom_call.1} parent=1 // loop_header_branch
      %18 = sbr.rel (%p16) target = $region8
    $region5: #{tpu_custom_call.1} parent=1 // loop_body
      %s20 = ssub.s32 %s15, 1
      %s21 = ssub.s32 %s15, 2
      %s22 = sadd.s32 %s15, 1
      %s24 = sadd.s32 %s23, 1
      %p27 = scmp.eq.s32.totalorder %s15, 1
      %p28 = scmp.ne.s32.totalorder %s23, %s25
      %p29 = scmp.eq.s32.totalorder %s15, 0
      %p30 = por %p28, %p29
      %p31 = scmp.ne.s32.totalorder %s23, %s25
      %p32 = scmp.eq.s32.totalorder %s20, 1
      %p33 = por %p31, %p32
      %p34 = scmp.ne.s32.totalorder %s25, %s26
      %p35 = scmp.eq.s32.totalorder %s20, 0
      %p36 = por %p34, %p35
      %p37 = scmp.ne.s32.totalorder %s25, %s26
      %p38 = scmp.eq.s32.totalorder %s21, 1
      %p39 = por %p37, %p38
      %p41 = scmp.ne.s32.totalorder %s26, %s40
      %p42 = scmp.eq.s32.totalorder %s21, 0
      %p43 = por %p41, %p42
      %s44 = ssub.s32 %s15, %s22
      %p45 = scmp.eq.s32.totalorder %s44, 0
      %s47 = sadd.s32 %s46, 1
      %s48 = scalar_select %p45, %s46, %s47
      %p51 = pneg %p45
      %p52 = scmp.eq.s32.totalorder %s15, 1
      %p53 = por %p51, %p52
      %p54 = scmp.ne.s32.totalorder %s46, %s49
      %p55 = scmp.eq.s32.totalorder %s15, 0
      %p56 = por %p54, %p55
      %p57 = scmp.ne.s32.totalorder %s46, %s49
      %p58 = scmp.eq.s32.totalorder %s20, 1
      %p59 = por %p57, %p58
      %p60 = scmp.ne.s32.totalorder %s49, %s50
      %p61 = scmp.eq.s32.totalorder %s20, 0
      %p62 = por %p60, %p61
      %p63 = scmp.ne.s32.totalorder %s49, %s50
      %p64 = scmp.eq.s32.totalorder %s21, 1
      %p65 = por %p63, %p64
      %p67 = scmp.ne.s32.totalorder %s50, %s66
      %p68 = scmp.eq.s32.totalorder %s21, 0
      %p69 = por %p67, %p68
      %s70 = ssub.s32 %s15, %s22
      %p71 = scmp.eq.s32.totalorder %s70, 0
      %s73 = sadd.s32 %s72, 1
      %s74 = scalar_select %p71, %s72, %s73
      %p77 = pneg %p71
      %p78 = scmp.eq.s32.totalorder %s15, 1
      %p79 = por %p77, %p78
      %p80 = scmp.ne.s32.totalorder %s72, %s75
      %p81 = scmp.eq.s32.totalorder %s15, 0
      %p82 = por %p80, %p81
      %p83 = scmp.ne.s32.totalorder %s72, %s75
      %p84 = scmp.eq.s32.totalorder %s20, 1
      %p85 = por %p83, %p84
      %p86 = scmp.ne.s32.totalorder %s75, %s76
      %p87 = scmp.eq.s32.totalorder %s20, 0
      %p88 = por %p86, %p87
      %p89 = scmp.ne.s32.totalorder %s75, %s76
      %p90 = scmp.eq.s32.totalorder %s21, 1
      %p91 = por %p89, %p90
      %p93 = scmp.ne.s32.totalorder %s76, %s92
      %p94 = scmp.eq.s32.totalorder %s21, 0
      %p95 = por %p93, %p94
      %p96 = scmp.le.s32.totalorder 1, %s15
      %p97 = scmp.lt.s32.totalorder %s15, 3
      %p98 = pnand %p96, %p97
      %p99 = pneg %p98
      // Predicated region
      $region9: #{tpu_custom_call.1} parent=5 // pred_check
        _
      $region10: #{tpu_custom_call.1} parent=5 // pred_check_branch
        %101 = sbr.rel (%p98) target = $region12
      $region11: #{tpu_custom_call.1} parent=5 // pred_region
        %s102 = ssub.s32 %s15, 1
        // Predicated region
        $region13: #{tpu_custom_call.1} parent=11 // pred_check
          %p103 = pneg %p36
        $region14: #{tpu_custom_call.1} parent=11 // pred_check_branch
          %105 = sbr.rel (%p103) target = $region16
        $region15: #{tpu_custom_call.1} parent=11 // pred_region
          %107 = vsyncadd [#allocation5], 0
          %s108 = sshll.u32 %s0, 4
          %s109 = int_to_ptr.vmem [resolvable:$true] %s108
          %114 = dma.vmem_to_smem %s109, 256, [#allocation2], [#allocation5], 128, 128, 8
        $region16: #{tpu_custom_call.1} parent=11 // pred_fallthru
          _
      $region12: #{tpu_custom_call.1} parent=5 // pred_fallthru
        _
      %p115 = scmp.lt.s32.totalorder %s15, 2
      // Predicated region
      $region17: #{tpu_custom_call.1} parent=5 // pred_check
        %p116 = pneg %p115
      $region18: #{tpu_custom_call.1} parent=5 // pred_check_branch
        %118 = sbr.rel (%p116) target = $region20
      $region19: #{tpu_custom_call.1} parent=5 // pred_region
        // Predicated region
        $region21: #{tpu_custom_call.1} parent=19 // pred_check
          %p119 = pneg %p56
        $region22: #{tpu_custom_call.1} parent=19 // pred_check_branch
          %121 = sbr.rel (%p119) target = $region24
        $region23: #{tpu_custom_call.1} parent=19 // pred_region
          #allocation9 [shape = 'u32[6]{0}', space=smem, size = 0x18, scoped, tag = 'DMA stride descriptor']
          %s122 = sand.u32 %s46, 1
          %s123 = scalar_lea.sflag [#allocation3], %s122
          %s124 = sand.u32 %s46, 1
          %s125 = smul.addr %s124, 64
          %s126 = scalar_lea.vmem [#allocation6], %s125
          %s127 = smul.u32 2, %s15
          %129 = vsyncadd %s123, 0
          %s130 = smul.addr %s127, 2
          %s131 = smul.addr %s130, 8
          %s132 = scalar_lea.hbm %s1, %s131
          %s134 = sshll.u32 1, 14
          %s135 = sxor.u32 4294967295, %s134
          %s137 = sld [smem:[#allocation0]]
          %s138 = sadd.s32 2, %s137
          %s140 = sshll.u32 7, 26
          %s141 = sxor.u32 4294967295, %s140
          %s142 = sand.u32 0, %s141
          %s143 = sshll.u32 %s138, 26
          %s144 = sor.u32 %s142, %s143
          %s145 = sshll.u32 %s132, 4
          %s146 = int_to_ptr.hbm [resolvable:$true] %s145
          %s147 = sshll.u32 %s126, 4
          %s148 = int_to_ptr.vmem [resolvable:$true] %s147
          %154 = sst [smem:[#allocation9]] 1024
          %s155 = scalar_lea.smem [#allocation9], 1
          %156 = sst [smem:[%s155]] 512
          %s157 = scalar_lea.smem [#allocation9], 2
          %158 = sst [smem:[%s157]] 4
          %s159 = scalar_lea.smem [#allocation9], 3
          %160 = sst [smem:[%s159]] 128
          %s161 = scalar_lea.smem [#allocation9], 4
          %162 = sst [smem:[%s161]] 128
          %s163 = scalar_lea.smem [#allocation9], 5
          %164 = sst [smem:[%s163]] 8
          %166 = dma.general %s146, 1024, %s148, %s123, [#allocation8], [#allocation9], %s144, 0
        $region24: #{tpu_custom_call.1} parent=19 // pred_fallthru
          _
      $region20: #{tpu_custom_call.1} parent=5 // pred_fallthru
        _
      %p167 = scmp.le.s32.totalorder 1, %s15
      %p168 = scmp.lt.s32.totalorder %s15, 3
      %p169 = pnand %p167, %p168
      %p170 = pneg %p169
      // Predicated region
      $region25: #{tpu_custom_call.1} parent=5 // pred_check
        _
      $region26: #{tpu_custom_call.1} parent=5 // pred_check_branch
        %172 = sbr.rel (%p169) target = $region28
      $region27: #{tpu_custom_call.1} parent=5 // pred_region
        %s173 = ssub.s32 %s15, 1
        // Predicated region
        $region29: #{tpu_custom_call.1} parent=27 // pred_check
          %p174 = pneg %p36
        $region30: #{tpu_custom_call.1} parent=27 // pred_check_branch
          %176 = sbr.rel (%p174) target = $region32
        $region31: #{tpu_custom_call.1} parent=27 // pred_region
          %178 = dma.done [#allocation5], 256
        $region32: #{tpu_custom_call.1} parent=27 // pred_fallthru
          _
        %s179 = sand.u32 %s49, 1
        %s180 = scalar_lea.sflag [#allocation3], %s179
        %s181 = sand.u32 %s49, 1
        %s182 = smul.addr %s181, 64
        %s183 = scalar_lea.vmem [#allocation6], %s182
        // Predicated region
        $region33: #{tpu_custom_call.1} parent=27 // pred_check
          %p184 = pneg %p62
        $region34: #{tpu_custom_call.1} parent=27 // pred_check_branch
          %186 = sbr.rel (%p184) target = $region36
        $region35: #{tpu_custom_call.1} parent=27 // pred_region
          %188 = dma.done %s180, 1024
        $region36: #{tpu_custom_call.1} parent=27 // pred_fallthru
          _
        %189 = sfence
        %p190 = pneg %p36
        %p191 = pneg %p33
        %s192 = sand.u32 %s49, 1
        %s193 = scalar_lea.sflag [#allocation3], %s192
        %s194 = sand.u32 %s49, 1
        %s195 = smul.addr %s194, 64
        %s196 = scalar_lea.vmem [#allocation6], %s195
        %p197 = pneg %p62
        %p198 = pneg %p59
        %p199 = pneg %p88
        %p200 = pneg %p85
        %s201 = sand.u32 %s75, 1
        %s202 = scalar_lea.sflag [#allocation4], %s201
        %s203 = sand.u32 %s75, 1
        %s204 = smul.addr %s203, 64
        %s205 = scalar_lea.vmem [#allocation7], %s204
        %s206 = smul.u32 2, %s20
        %s207 = smul.u32 2, %s20
        %s208 = smul.u32 %s20, 2
        %v209 = vld [vmem:[%s183] sm:$0xff]
        %v210 = vld [vmem:[%s183 + $0x8] sm:$0xff]
        %v211 = vld [vmem:[%s183 + $0x10] sm:$0xff]
        %v212 = vld [vmem:[%s183 + $0x18] sm:$0xff]
        %v213 = vld [vmem:[%s183 + $0x20] sm:$0xff]
        %v214 = vld [vmem:[%s183 + $0x28] sm:$0xff]
        %v215 = vld [vmem:[%s183 + $0x30] sm:$0xff]
        %v216 = vld [vmem:[%s183 + $0x38] sm:$0xff]
        %225 = vrot.lane.b32.xlu0 %v209, 1
        %v226 = vpop.permute.xlu0 %225
        %227 = vrot.lane.b32.xlu0 %v210, 1
        %v228 = vpop.permute.xlu0 %227
        %229 = vrot.lane.b32.xlu0 %v211, 1
        %v230 = vpop.permute.xlu0 %229
        %231 = vrot.lane.b32.xlu0 %v212, 1
        %v232 = vpop.permute.xlu0 %231
        %233 = vrot.lane.b32.xlu0 %v213, 1
        %v234 = vpop.permute.xlu0 %233
        %235 = vrot.lane.b32.xlu0 %v214, 1
        %v236 = vpop.permute.xlu0 %235
        %237 = vrot.lane.b32.xlu0 %v215, 1
        %v238 = vpop.permute.xlu0 %237
        %239 = vrot.lane.b32.xlu0 %v216, 1
        %v240 = vpop.permute.xlu0 %239
        %vm249 = vcmask 7168
        %v250 = vsel %vm249, 0.0, %v226
        %v251 = vsel %vm249, 0.0, %v228
        %v252 = vsel %vm249, 0.0, %v230
        %v253 = vsel %vm249, 0.0, %v232
        %v254 = vsel %vm249, 0.0, %v234
        %v255 = vsel %vm249, 0.0, %v236
        %v256 = vsel %vm249, 0.0, %v238
        %v257 = vsel %vm249, 0.0, %v240
        %258 = vrot.lane.b32.xlu0 %v209, 127
        %v259 = vpop.permute.xlu0 %258
        %260 = vrot.lane.b32.xlu0 %v210, 127
        %v261 = vpop.permute.xlu0 %260
        %262 = vrot.lane.b32.xlu0 %v211, 127
        %v263 = vpop.permute.xlu0 %262
        %264 = vrot.lane.b32.xlu0 %v212, 127
        %v265 = vpop.permute.xlu0 %264
        %266 = vrot.lane.b32.xlu0 %v213, 127
        %v267 = vpop.permute.xlu0 %266
        %268 = vrot.lane.b32.xlu0 %v214, 127
        %v269 = vpop.permute.xlu0 %268
        %270 = vrot.lane.b32.xlu0 %v215, 127
        %v271 = vpop.permute.xlu0 %270
        %272 = vrot.lane.b32.xlu0 %v216, 127
        %v273 = vpop.permute.xlu0 %272
        %vm282 = vcmask 121856
        %v283 = vsel %vm282, %v259, 0.0
        %v284 = vsel %vm282, %v261, 0.0
        %v285 = vsel %vm282, %v263, 0.0
        %v286 = vsel %vm282, %v265, 0.0
        %v287 = vsel %vm282, %v267, 0.0
        %v288 = vsel %vm282, %v269, 0.0
        %v289 = vsel %vm282, %v271, 0.0
        %v290 = vsel %vm282, %v273, 0.0
        %s291 = sld [smem:[#allocation2 + %s208]]
        %s292 = sshra.s32 %s208, 7
        %s293 = sand.u32 %s208, 127
        %s294 = sadd.s32 %s292, 1
        %s295 = smul.u32 %s294, 128
        %s296 = sshra.s32 %s208, 7
        %s297 = sand.u32 %s208, 127
        %s298 = sadd.s32 %s295, %s297
        %s299 = sld [smem:[#allocation2 + %s298]]
        %s300 = sadd.s32 %s292, 2
        %s301 = smul.u32 %s300, 128
        %s302 = sadd.s32 %s301, %s297
        %s303 = sld [smem:[#allocation2 + %s302]]
        %s304 = sadd.s32 %s292, 3
        %s305 = smul.u32 %s304, 128
        %s306 = sadd.s32 %s305, %s297
        %s307 = sld [smem:[#allocation2 + %s306]]
        %s308 = sadd.s32 %s292, 4
        %s309 = smul.u32 %s308, 128
        %s310 = sadd.s32 %s309, %s297
        %s311 = sld [smem:[#allocation2 + %s310]]
        %s312 = sadd.s32 %s292, 5
        %s313 = smul.u32 %s312, 128
        %s314 = sadd.s32 %s313, %s297
        %s315 = sld [smem:[#allocation2 + %s314]]
        %s316 = sadd.s32 %s292, 6
        %s317 = smul.u32 %s316, 128
        %s318 = sadd.s32 %s317, %s297
        %s319 = sld [smem:[#allocation2 + %s318]]
        %s320 = sadd.s32 %s292, 7
        %s321 = smul.u32 %s320, 128
        %s322 = sadd.s32 %s321, %s297
        %s323 = sld [smem:[#allocation2 + %s322]]
        %s324 = sadd.s32 %s292, 8
        %s325 = smul.u32 %s324, 128
        %s326 = sadd.s32 %s325, %s297
        %s327 = sld [smem:[#allocation2 + %s326]]
        %s328 = sadd.s32 %s292, 9
        %s329 = smul.u32 %s328, 128
        %s330 = sadd.s32 %s329, %s297
        %s331 = sld [smem:[#allocation2 + %s330]]
        %v332 = vstv %s291
        %v333 = vmul.f32 %v332, %v250
        %v334 = vmul.f32 %v332, %v251
        %v335 = vmul.f32 %v332, %v254
        %v336 = vmul.f32 %v332, %v255
        %v337 = vstv %s299
        %v338 = vmul.f32 %v337, %v209
        %v339 = vmul.f32 %v337, %v210
        %v340 = vmul.f32 %v337, %v213
        %v341 = vmul.f32 %v337, %v214
        %v342 = vadd.f32 %v333, %v338
        %v343 = vadd.f32 %v334, %v339
        %v344 = vadd.f32 %v335, %v340
        %v345 = vadd.f32 %v336, %v341
        %v346 = vstv %s303
        %v347 = vmul.f32 %v346, %v283
        %v348 = vmul.f32 %v346, %v284
        %v349 = vmul.f32 %v346, %v287
        %v350 = vmul.f32 %v346, %v288
        %v351 = vadd.f32 %v342, %v347
        %v352 = vadd.f32 %v343, %v348
        %v353 = vadd.f32 %v344, %v349
        %v354 = vadd.f32 %v345, %v350
        %v355 = vstv %s307
        %v356 = vmul.f32 %v355, %v250
        %v357 = vmul.f32 %v355, %v251
        %v358 = vmul.f32 %v355, %v254
        %v359 = vmul.f32 %v355, %v255
        %v360 = vstv %s311
        %v361 = vmul.f32 %v360, %v209
        %v362 = vmul.f32 %v360, %v210
        %v363 = vmul.f32 %v360, %v213
        %v364 = vmul.f32 %v360, %v214
        %v365 = vadd.f32 %v356, %v361
        %v366 = vadd.f32 %v357, %v362
        %v367 = vadd.f32 %v358, %v363
        %v368 = vadd.f32 %v359, %v364
        %v369 = vstv %s315
        %v370 = vmul.f32 %v369, %v283
        %v371 = vmul.f32 %v369, %v284
        %v372 = vmul.f32 %v369, %v287
        %v373 = vmul.f32 %v369, %v288
        %v374 = vadd.f32 %v365, %v370
        %v375 = vadd.f32 %v366, %v371
        %v376 = vadd.f32 %v367, %v372
        %v377 = vadd.f32 %v368, %v373
        %v378 = vstv %s319
        %v379 = vmul.f32 %v378, %v250
        %v380 = vmul.f32 %v378, %v251
        %v381 = vmul.f32 %v378, %v254
        %v382 = vmul.f32 %v378, %v255
        %v383 = vstv %s323
        %v384 = vmul.f32 %v383, %v209
        %v385 = vmul.f32 %v383, %v210
        %v386 = vmul.f32 %v383, %v213
        %v387 = vmul.f32 %v383, %v214
        %v388 = vadd.f32 %v379, %v384
        %v389 = vadd.f32 %v380, %v385
        %v390 = vadd.f32 %v381, %v386
        %v391 = vadd.f32 %v382, %v387
        %v392 = vstv %s327
        %v393 = vmul.f32 %v392, %v283
        %v394 = vmul.f32 %v392, %v284
        %v395 = vmul.f32 %v392, %v287
        %v396 = vmul.f32 %v392, %v288
        %v397 = vadd.f32 %v388, %v393
        %v398 = vadd.f32 %v389, %v394
        %v399 = vadd.f32 %v390, %v395
        %v400 = vadd.f32 %v391, %v396
        %vm405 = vcmask 1040384
        %v406 = vrot.slane %v351, 7
        %v407 = vrot.slane %v352, 7
        %v408 = vsel %vm405, %v406, %v407
        %v409 = vrot.slane %v353, 7
        %v410 = vrot.slane %v354, 7
        %v411 = vsel %vm405, %v409, %v410
        %v416 = vsel %vm405, 0.0, %v406
        %v417 = vsel %vm405, 0.0, %v409
        %v418 = vadd.f32 %v374, %v416
        %v419 = vadd.f32 %v375, %v408
        %v420 = vadd.f32 %v376, %v417
        %v421 = vadd.f32 %v377, %v411
        %vm426 = vcmask 1046528
        %v427 = vrot.slane %v397, 1
        %v428 = vrot.slane %v398, 1
        %v429 = vsel %vm426, %v427, %v428
        %v430 = vrot.slane %v399, 1
        %v431 = vrot.slane %v400, 1
        %v432 = vsel %vm426, %v430, %v431
        %v437 = vsel %vm426, %v428, 0.0
        %v438 = vsel %vm426, %v431, 0.0
        %v439 = vadd.f32 %v418, %v429
        %v440 = vadd.f32 %v419, %v437
        %v441 = vadd.f32 %v420, %v432
        %v442 = vadd.f32 %v421, %v438
        %v443 = vstv %s331
        %v444 = vadd.f32 %v439, %v443
        %v445 = vadd.f32 %v440, %v443
        %v446 = vadd.f32 %v441, %v443
        %v447 = vadd.f32 %v442, %v443
        %vm448 = vcmask 130048
        %v449 = vsel %vm448, %v444, 0.0
        %v450 = vsel %vm448, %v445, 0.0
        %v451 = vadd.f32 %v449, %v450
        %v452 = vsel %vm448, %v446, 0.0
        %v453 = vadd.f32 %v451, %v452
        %v454 = vsel %vm448, %v447, 0.0
        %v455 = vadd.f32 %v453, %v454
        %456 = vadd.xlane.f32.xlu0 %v455
        %v457 = vpop.xlane.xlu0 %456
        %v458 = vrot.slane %v457, 4
        %v459 = vadd.f32 %v457, %v458
        %v460 = vrot.slane %v459, 2
        %v461 = vadd.f32 %v459, %v460
        %v462 = vrot.slane %v461, 1
        %v463 = vadd.f32 %v461, %v462
        %s464 = vtos %v463
        %v465 = vmul.f32 %v444, %v444
        %v466 = vmul.f32 %v445, %v445
        %v467 = vmul.f32 %v446, %v446
        %v468 = vmul.f32 %v447, %v447
        %v469 = vsel %vm448, %v465, 0.0
        %v470 = vsel %vm448, %v466, 0.0
        %v471 = vadd.f32 %v469, %v470
        %v472 = vsel %vm448, %v467, 0.0
        %v473 = vadd.f32 %v471, %v472
        %v474 = vsel %vm448, %v468, 0.0
        %v475 = vadd.f32 %v473, %v474
        %476 = vadd.xlane.f32.xlu0 %v475
        %v477 = vpop.xlane.xlu0 %476
        %v478 = vrot.slane %v477, 4
        %v479 = vadd.f32 %v477, %v478
        %v480 = vrot.slane %v479, 2
        %v481 = vadd.f32 %v479, %v480
        %v482 = vrot.slane %v481, 1
        %v483 = vadd.f32 %v481, %v482
        %s484 = vtos %v483
        %v485 = vrcp.pop 512.0
        %v486 = vmul.f32 512.0, %v485
        %v487 = vsub.f32 1.0, %v486
        %v488 = vmul.f32 %v485, %v487
        %v489 = vadd.f32 %v485, %v488
        %vm490 = vweird.f32 %v485
        %v491 = vsel %vm490, %v485, %v489
        %s492 = vtos %v491
        %s493 = smul.f32 %s464, %s492
        %v494 = vrcp.pop 512.0
        %v495 = vmul.f32 512.0, %v494
        %v496 = vsub.f32 1.0, %v495
        %v497 = vmul.f32 %v494, %v496
        %v498 = vadd.f32 %v494, %v497
        %vm499 = vweird.f32 %v494
        %v500 = vsel %vm499, %v494, %v498
        %s501 = vtos %v500
        %s502 = smul.f32 %s484, %s501
        %s503 = smul.f32 %s493, %s493
        %s504 = ssub.f32 %s502, %s503
        %s505 = smax.f32 %s504, 0.0
        %s506 = sadd.f32 %s505, 1e-05
        %v507 = vstv %s506
        %v508 = vrsqrt.pop %v507
        %v509 = vmul.f32 %v508, %v507
        %v510 = vmul.f32 %v509, %v508
        %v511 = vmul.f32 0.5, %v510
        %v512 = vsub.f32 1.5, %v511
        %v513 = vmul.f32 %v508, %v512
        %vm514 = vweird.f32 %v507
        %vm515 = vweird.f32 %v508
        %vm516 = vmor %vm514, %vm515
        %v517 = vsel %vm516, %v508, %v513
        %s518 = vtos %v517
        %v519 = vstv %s493
        %v520 = vsub.f32 %v444, %v519
        %v521 = vsub.f32 %v445, %v519
        %v522 = vsub.f32 %v446, %v519
        %v523 = vsub.f32 %v447, %v519
        %v524 = vstv %s518
        %v525 = vmul.f32 %v520, %v524
        %v526 = vmul.f32 %v521, %v524
        %v527 = vmul.f32 %v522, %v524
        %v528 = vmul.f32 %v523, %v524
        %v529 = vmax.f32 %v209, %v525
        %v530 = vmax.f32 %v210, %v526
        %v531 = vmax.f32 %v213, %v527
        %v532 = vmax.f32 %v214, %v528
        %533 = vst.msk [vmem:[%s205] sm:$0xff] %vm448, %v529
        %534 = vst.msk [vmem:[%s205 + $0x8] sm:$0xff] %vm448, %v530
        %535 = vst.msk [vmem:[%s205 + $0x20] sm:$0xff] %vm448, %v531
        %536 = vst.msk [vmem:[%s205 + $0x28] sm:$0xff] %vm448, %v532
        %s537 = sadd.s32 %s208, 1
        %s538 = sld [smem:[#allocation2 + %s537]]
        %s539 = sshra.s32 %s537, 7
        %s540 = sand.u32 %s537, 127
        %s541 = sadd.s32 %s539, 1
        %s542 = smul.u32 %s541, 128
        %s543 = sshra.s32 %s537, 7
        %s544 = sand.u32 %s537, 127
        %s545 = sadd.s32 %s542, %s544
        %s546 = sld [smem:[#allocation2 + %s545]]
        %s547 = sadd.s32 %s539, 2
        %s548 = smul.u32 %s547, 128
        %s549 = sadd.s32 %s548, %s544
        %s550 = sld [smem:[#allocation2 + %s549]]
        %s551 = sadd.s32 %s539, 3
        %s552 = smul.u32 %s551, 128
        %s553 = sadd.s32 %s552, %s544
        %s554 = sld [smem:[#allocation2 + %s553]]
        %s555 = sadd.s32 %s539, 4
        %s556 = smul.u32 %s555, 128
        %s557 = sadd.s32 %s556, %s544
        %s558 = sld [smem:[#allocation2 + %s557]]
        %s559 = sadd.s32 %s539, 5
        %s560 = smul.u32 %s559, 128
        %s561 = sadd.s32 %s560, %s544
        %s562 = sld [smem:[#allocation2 + %s561]]
        %s563 = sadd.s32 %s539, 6
        %s564 = smul.u32 %s563, 128
        %s565 = sadd.s32 %s564, %s544
        %s566 = sld [smem:[#allocation2 + %s565]]
        %s567 = sadd.s32 %s539, 7
        %s568 = smul.u32 %s567, 128
        %s569 = sadd.s32 %s568, %s544
        %s570 = sld [smem:[#allocation2 + %s569]]
        %s571 = sadd.s32 %s539, 8
        %s572 = smul.u32 %s571, 128
        %s573 = sadd.s32 %s572, %s544
        %s574 = sld [smem:[#allocation2 + %s573]]
        %s575 = sadd.s32 %s539, 9
        %s576 = smul.u32 %s575, 128
        %s577 = sadd.s32 %s576, %s544
        %s578 = sld [smem:[#allocation2 + %s577]]
        %v579 = vstv %s538
        %v580 = vmul.f32 %v579, %v252
        %v581 = vmul.f32 %v579, %v253
        %v582 = vmul.f32 %v579, %v256
        %v583 = vmul.f32 %v579, %v257
        %v584 = vstv %s546
        %v585 = vmul.f32 %v584, %v211
        %v586 = vmul.f32 %v584, %v212
        %v587 = vmul.f32 %v584, %v215
        %v588 = vmul.f32 %v584, %v216
        %v589 = vadd.f32 %v580, %v585
        %v590 = vadd.f32 %v581, %v586
        %v591 = vadd.f32 %v582, %v587
        %v592 = vadd.f32 %v583, %v588
        %v593 = vstv %s550
        %v594 = vmul.f32 %v593, %v285
        %v595 = vmul.f32 %v593, %v286
        %v596 = vmul.f32 %v593, %v289
        %v597 = vmul.f32 %v593, %v290
        %v598 = vadd.f32 %v589, %v594
        %v599 = vadd.f32 %v590, %v595
        %v600 = vadd.f32 %v591, %v596
        %v601 = vadd.f32 %v592, %v597
        %v602 = vstv %s554
        %v603 = vmul.f32 %v602, %v252
        %v604 = vmul.f32 %v602, %v253
        %v605 = vmul.f32 %v602, %v256
        %v606 = vmul.f32 %v602, %v257
        %v607 = vstv %s558
        %v608 = vmul.f32 %v607, %v211
        %v609 = vmul.f32 %v607, %v212
        %v610 = vmul.f32 %v607, %v215
        %v611 = vmul.f32 %v607, %v216
        %v612 = vadd.f32 %v603, %v608
        %v613 = vadd.f32 %v604, %v609
        %v614 = vadd.f32 %v605, %v610
        %v615 = vadd.f32 %v606, %v611
        %v616 = vstv %s562
        %v617 = vmul.f32 %v616, %v285
        %v618 = vmul.f32 %v616, %v286
        %v619 = vmul.f32 %v616, %v289
        %v620 = vmul.f32 %v616, %v290
        %v621 = vadd.f32 %v612, %v617
        %v622 = vadd.f32 %v613, %v618
        %v623 = vadd.f32 %v614, %v619
        %v624 = vadd.f32 %v615, %v620
        %v625 = vstv %s566
        %v626 = vmul.f32 %v625, %v252
        %v627 = vmul.f32 %v625, %v253
        %v628 = vmul.f32 %v625, %v256
        %v629 = vmul.f32 %v625, %v257
        %v630 = vstv %s570
        %v631 = vmul.f32 %v630, %v211
        %v632 = vmul.f32 %v630, %v212
        %v633 = vmul.f32 %v630, %v215
        %v634 = vmul.f32 %v630, %v216
        %v635 = vadd.f32 %v626, %v631
        %v636 = vadd.f32 %v627, %v632
        %v637 = vadd.f32 %v628, %v633
        %v638 = vadd.f32 %v629, %v634
        %v639 = vstv %s574
        %v640 = vmul.f32 %v639, %v285
        %v641 = vmul.f32 %v639, %v286
        %v642 = vmul.f32 %v639, %v289
        %v643 = vmul.f32 %v639, %v290
        %v644 = vadd.f32 %v635, %v640
        %v645 = vadd.f32 %v636, %v641
        %v646 = vadd.f32 %v637, %v642
        %v647 = vadd.f32 %v638, %v643
        %v652 = vrot.slane %v598, 7
        %v653 = vrot.slane %v599, 7
        %v654 = vsel %vm405, %v652, %v653
        %v655 = vrot.slane %v600, 7
        %v656 = vrot.slane %v601, 7
        %v657 = vsel %vm405, %v655, %v656
        %v662 = vsel %vm405, 0.0, %v652
        %v663 = vsel %vm405, 0.0, %v655
        %v664 = vadd.f32 %v621, %v662
        %v665 = vadd.f32 %v622, %v654
        %v666 = vadd.f32 %v623, %v663
        %v667 = vadd.f32 %v624, %v657
        %v672 = vrot.slane %v644, 1
        %v673 = vrot.slane %v645, 1
        %v674 = vsel %vm426, %v672, %v673
        %v675 = vrot.slane %v646, 1
        %v676 = vrot.slane %v647, 1
        %v677 = vsel %vm426, %v675, %v676
        %v682 = vsel %vm426, %v673, 0.0
        %v683 = vsel %vm426, %v676, 0.0
        %v684 = vadd.f32 %v664, %v674
        %v685 = vadd.f32 %v665, %v682
        %v686 = vadd.f32 %v666, %v677
        %v687 = vadd.f32 %v667, %v683
        %v688 = vstv %s578
        %v689 = vadd.f32 %v684, %v688
        %v690 = vadd.f32 %v685, %v688
        %v691 = vadd.f32 %v686, %v688
        %v692 = vadd.f32 %v687, %v688
        %v693 = vsel %vm448, %v689, 0.0
        %v694 = vsel %vm448, %v690, 0.0
        %v695 = vadd.f32 %v693, %v694
        %v696 = vsel %vm448, %v691, 0.0
        %v697 = vadd.f32 %v695, %v696
        %v698 = vsel %vm448, %v692, 0.0
        %v699 = vadd.f32 %v697, %v698
        %700 = vadd.xlane.f32.xlu0 %v699
        %v701 = vpop.xlane.xlu0 %700
        %v702 = vrot.slane %v701, 4
        %v703 = vadd.f32 %v701, %v702
        %v704 = vrot.slane %v703, 2
        %v705 = vadd.f32 %v703, %v704
        %v706 = vrot.slane %v705, 1
        %v707 = vadd.f32 %v705, %v706
        %s708 = vtos %v707
        %v709 = vmul.f32 %v689, %v689
        %v710 = vmul.f32 %v690, %v690
        %v711 = vmul.f32 %v691, %v691
        %v712 = vmul.f32 %v692, %v692
        %v713 = vsel %vm448, %v709, 0.0
        %v714 = vsel %vm448, %v710, 0.0
        %v715 = vadd.f32 %v713, %v714
        %v716 = vsel %vm448, %v711, 0.0
        %v717 = vadd.f32 %v715, %v716
        %v718 = vsel %vm448, %v712, 0.0
        %v719 = vadd.f32 %v717, %v718
        %720 = vadd.xlane.f32.xlu0 %v719
        %v721 = vpop.xlane.xlu0 %720
        %v722 = vrot.slane %v721, 4
        %v723 = vadd.f32 %v721, %v722
        %v724 = vrot.slane %v723, 2
        %v725 = vadd.f32 %v723, %v724
        %v726 = vrot.slane %v725, 1
        %v727 = vadd.f32 %v725, %v726
        %s728 = vtos %v727
        %v729 = vrcp.pop 512.0
        %v730 = vmul.f32 512.0, %v729
        %v731 = vsub.f32 1.0, %v730
        %v732 = vmul.f32 %v729, %v731
        %v733 = vadd.f32 %v729, %v732
        %vm734 = vweird.f32 %v729
        %v735 = vsel %vm734, %v729, %v733
        %s736 = vtos %v735
        %s737 = smul.f32 %s708, %s736
        %v738 = vrcp.pop 512.0
        %v739 = vmul.f32 512.0, %v738
        %v740 = vsub.f32 1.0, %v739
        %v741 = vmul.f32 %v738, %v740
        %v742 = vadd.f32 %v738, %v741
        %vm743 = vweird.f32 %v738
        %v744 = vsel %vm743, %v738, %v742
        %s745 = vtos %v744
        %s746 = smul.f32 %s728, %s745
        %s747 = smul.f32 %s737, %s737
        %s748 = ssub.f32 %s746, %s747
        %s749 = smax.f32 %s748, 0.0
        %s750 = sadd.f32 %s749, 1e-05
        %v751 = vstv %s750
        %v752 = vrsqrt.pop %v751
        %v753 = vmul.f32 %v752, %v751
        %v754 = vmul.f32 %v753, %v752
        %v755 = vmul.f32 0.5, %v754
        %v756 = vsub.f32 1.5, %v755
        %v757 = vmul.f32 %v752, %v756
        %vm758 = vweird.f32 %v751
        %vm759 = vweird.f32 %v752
        %vm760 = vmor %vm758, %vm759
        %v761 = vsel %vm760, %v752, %v757
        %s762 = vtos %v761
        %v763 = vstv %s737
        %v764 = vsub.f32 %v689, %v763
        %v765 = vsub.f32 %v690, %v763
        %v766 = vsub.f32 %v691, %v763
        %v767 = vsub.f32 %v692, %v763
        %v768 = vstv %s762
        %v769 = vmul.f32 %v764, %v768
        %v770 = vmul.f32 %v765, %v768
        %v771 = vmul.f32 %v766, %v768
        %v772 = vmul.f32 %v767, %v768
        %v773 = vmax.f32 %v211, %v769
        %v774 = vmax.f32 %v212, %v770
        %v775 = vmax.f32 %v215, %v771
        %v776 = vmax.f32 %v216, %v772
        %s777 = scalar_lea.vmem %s205, 16 [#allocation7]
        %778 = vst.msk [vmem:[%s777] sm:$0xff] %vm448, %v773
        %779 = vst.msk [vmem:[%s777 + $0x8] sm:$0xff] %vm448, %v774
        %780 = vst.msk [vmem:[%s777 + $0x20] sm:$0xff] %vm448, %v775
        %781 = vst.msk [vmem:[%s777 + $0x28] sm:$0xff] %vm448, %v776
        %s782 = sand.u32 %s75, 1
        %s783 = scalar_lea.sflag [#allocation4], %s782
        %s784 = sand.u32 %s75, 1
        %s785 = smul.addr %s784, 64
        %s786 = scalar_lea.vmem [#allocation7], %s785
        // Predicated region
        $region37: #{tpu_custom_call.1} parent=27 // pred_check
          %p787 = pneg %p85
        $region38: #{tpu_custom_call.1} parent=27 // pred_check_branch
          %789 = sbr.rel (%p787) target = $region40
        $region39: #{tpu_custom_call.1} parent=27 // pred_region
          #allocation11 [shape = 'u32[6]{0}', space=smem, size = 0x18, scoped, tag = 'DMA stride descriptor']
          %s790 = smul.u32 2, %s20
          %792 = vsyncadd %s783, 0
          %s793 = smul.addr %s790, 2
          %s794 = smul.addr %s793, 8
          %s795 = scalar_lea.hbm %s2, %s794
          %s797 = sshll.u32 1, 14
          %s798 = sxor.u32 4294967295, %s797
          %s801 = sshll.u32 7, 18
          %s802 = sxor.u32 4294967295, %s801
          %s803 = sand.u32 0, %s802
          %s805 = sor.u32 %s803, 0
          %s806 = sshll.u32 %s786, 4
          %s807 = int_to_ptr.vmem [resolvable:$true] %s806
          %s808 = sshll.u32 %s795, 4
          %s809 = int_to_ptr.hbm [resolvable:$true] %s808
          %815 = sst [smem:[#allocation11]] 512
          %s816 = scalar_lea.smem [#allocation11], 1
          %817 = sst [smem:[%s816]] 1024
          %s818 = scalar_lea.smem [#allocation11], 2
          %819 = sst [smem:[%s818]] 4
          %s820 = scalar_lea.smem [#allocation11], 3
          %821 = sst [smem:[%s820]] 128
          %s822 = scalar_lea.smem [#allocation11], 4
          %823 = sst [smem:[%s822]] 128
          %s824 = scalar_lea.smem [#allocation11], 5
          %825 = sst [smem:[%s824]] 8
          %827 = dma.general %s807, 1024, %s809, %s783, [#allocation10], [#allocation11], %s805, 0
        $region40: #{tpu_custom_call.1} parent=27 // pred_fallthru
          _
      $region28: #{tpu_custom_call.1} parent=5 // pred_fallthru
        _
      %p828 = scmp.le.s32.totalorder 2, %s15
      // Predicated region
      $region41: #{tpu_custom_call.1} parent=5 // pred_check
        %p829 = pneg %p828
      $region42: #{tpu_custom_call.1} parent=5 // pred_check_branch
        %831 = sbr.rel (%p829) target = $region44
      $region43: #{tpu_custom_call.1} parent=5 // pred_region
        %s832 = ssub.s32 %s15, 2
        // Predicated region
        $region45: #{tpu_custom_call.1} parent=43 // pred_check
          %p833 = pneg %p91
        $region46: #{tpu_custom_call.1} parent=43 // pred_check_branch
          %835 = sbr.rel (%p833) target = $region48
        $region47: #{tpu_custom_call.1} parent=43 // pred_region
          %s836 = sand.u32 %s76, 1
          %s837 = scalar_lea.sflag [#allocation4], %s836
          %s838 = sand.u32 %s76, 1
          %s839 = smul.addr %s838, 64
          %s840 = scalar_lea.vmem [#allocation7], %s839
          %842 = dma.done %s837, 1024
        $region48: #{tpu_custom_call.1} parent=43 // pred_fallthru
          _
      $region44: #{tpu_custom_call.1} parent=5 // pred_fallthru
        _
    $region6: #{tpu_custom_call.1} parent=1 // loop_footer
      %s19 = sadd.s32 1, %s15
    $region7: #{tpu_custom_call.1} parent=1 // loop_footer_branch
      %14 = sbr.rel target = $region3
    $region8: #{tpu_custom_call.1} parent=1 // loop_exit
      _
    %843 = vsyncpa [#allocation3], 1
    %s844 = scalar_lea.sflag [#allocation3], 1
    %845 = vsyncpa %s844, 1
    %846 = vsyncpa [#allocation4], 1
    %s847 = scalar_lea.sflag [#allocation4], 1
    %848 = vsyncpa %s847, 1
    %849 = vsyncpa [#allocation5], 1
    %s850 = scalar_lea.sflag [#allocation5], 1
    %851 = vsyncpa %s850, 1

</llo_original>
